<compile_context>
chip_gen: v7x
topology: tpu7x:2x2x1
jax: 0.10.0
libtpu: 0.0.40
codegen_flags: <defaults>
</compile_context>

<pallas_src>
import functools

import jax
import jax.numpy as jnp
import numpy as np
from jax.experimental import pallas as pl
from jax.experimental.pallas import tpu as pltpu


# -----------------------------------------------------------------------------
# Kernel: per-row LayerNorm over a (TM, D) tile. Compute in f32, store in the
# output's native dtype.
# -----------------------------------------------------------------------------
def _layer_norm_kernel(x_ref, a_ref, b_ref, o_ref, *, eps):
    x = x_ref[...].astype(jnp.float32)               # (TM, D)
    d = x.shape[-1]
    mean = jnp.mean(x, axis=-1, keepdims=True)       # (TM, 1)
    xc = x - mean
    # torch.Tensor.std defaults to the unbiased estimator (divide by D-1).
    var = jnp.sum(xc * xc, axis=-1, keepdims=True) * (1.0 / (d - 1))
    std = jnp.sqrt(var)
    inv = pl.reciprocal(std + eps, approx=False)     # matches (std + eps) denom
    a = a_ref[...].astype(jnp.float32)               # (1, D)
    b = b_ref[...].astype(jnp.float32)               # (1, D)
    o_ref[...] = (a * (xc * inv) + b).astype(o_ref.dtype)


# -----------------------------------------------------------------------------
# Wrapper: flatten leading dims, tile rows, no padding, no dtype round trips.
# -----------------------------------------------------------------------------
def layer_norm(x, a_2, b_2, eps=1e-6, target_block_bytes=2 * 1024 * 1024):
    orig_shape = x.shape
    d = orig_shape[-1]

    x2 = x.reshape(-1, d)                  # original dtype, view-like reshape
    n_rows = x2.shape[0]
    itemsize = jnp.dtype(x2.dtype).itemsize

    # Row-tile size: ~target_block_bytes per x block, multiple of 8 sublanes,
    # never larger than the (rounded-up) row count.
    tm = max(8, (target_block_bytes // (d * itemsize)) // 8 * 8)
    tm = min(tm, ((n_rows + 7) // 8) * 8)

    grid = (pl.cdiv(n_rows, tm),)          # partial tail block masked by Pallas

    a2 = a_2.reshape(1, d)
    b2 = b_2.reshape(1, d)

    out = pl.pallas_call(
        functools.partial(_layer_norm_kernel, eps=eps),
        out_shape=jax.ShapeDtypeStruct((n_rows, d), x.dtype),
        grid=grid,
        in_specs=[
            pl.BlockSpec((tm, d), lambda i: (i, 0)),   # x row tile
            pl.BlockSpec((1, d), lambda i: (0, 0)),    # a_2 (gain), reused
            pl.BlockSpec((1, d), lambda i: (0, 0)),    # b_2 (bias), reused
        ],
        out_specs=pl.BlockSpec((tm, d), lambda i: (i, 0)),
        compiler_params=pltpu.CompilerParams(
            dimension_semantics=("parallel",),
            vmem_limit_bytes=48 * 1024 * 1024,
        ),
    )(x2, a2, b2)

    return out.reshape(orig_shape)


# -----------------------------------------------------------------------------
# Pure-JAX reference (mirrors the PyTorch forward, unbiased std).
# -----------------------------------------------------------------------------
def layer_norm_ref(x, a_2, b_2, eps=1e-6):
    x32 = x.astype(jnp.float32)
    mean = jnp.mean(x32, axis=-1, keepdims=True)
    var = jnp.sum((x32 - mean) ** 2, axis=-1, keepdims=True) / (x.shape[-1] - 1)
    std = jnp.sqrt(var)
    out = a_2.astype(jnp.float32) * (x32 - mean) / (std + eps) + b_2.astype(jnp.float32)
    return out.astype(x.dtype)


if __name__ == "__main__":
    B, S, D = 2, 8, 128   # features = 128 (lane-aligned), rows = B*S = 16

    key = jax.random.PRNGKey(0)
    kx, ka, kb = jax.random.split(key, 3)

    x = jax.random.normal(kx, (B, S, D), jnp.float32)
    # nn.Parameter defaults are ones/zeros; perturb slightly so the affine
    # part is actually exercised.
    a_2 = 1.0 + 0.1 * jax.random.normal(ka, (D,), jnp.float32)
    b_2 = 0.05 * jax.random.normal(kb, (D,), jnp.float32)

    # f32 path
    out = layer_norm(x, a_2, b_2, eps=1e-6)
    jax.block_until_ready(out)
    ref = layer_norm_ref(x, a_2, b_2, eps=1e-6)
    np.testing.assert_allclose(np.asarray(out), np.asarray(ref),
                               rtol=1e-5, atol=1e-5)
    assert out.shape == (B, S, D) and out.dtype == x.dtype

    # Non-multiple-of-8 row count exercises the masked partial tail block.
    x_odd = jax.random.normal(jax.random.PRNGKey(1), (3, 5, D), jnp.float32)
    out_odd = layer_norm(x_odd, a_2, b_2, eps=1e-6)
    jax.block_until_ready(out_odd)
    np.testing.assert_allclose(np.asarray(out_odd),
                               np.asarray(layer_norm_ref(x_odd, a_2, b_2)),
                               rtol=1e-5, atol=1e-5)

    # bf16 path exercises the in-kernel upcast / native-dtype store.
    x_bf = x.astype(jnp.bfloat16)
    out_bf = layer_norm(x_bf, a_2, b_2, eps=1e-6)
    jax.block_until_ready(out_bf)
    assert out_bf.dtype == jnp.bfloat16
    np.testing.assert_allclose(np.asarray(out_bf, dtype=np.float32),
                               np.asarray(layer_norm_ref(x_bf, a_2, b_2),
                                          dtype=np.float32),
                               rtol=5e-2, atol=5e-2)

    print("KERNEL_OK")
</pallas_src>

<mosaic_0001>
module attributes {stable_mosaic.version = 11 : i64} {
  func.func @_layer_norm_kernel(%arg0: i32, %arg1: memref<16x128xf32, #tpu.memory_space<vmem>>, %arg2: memref<1x128xf32, #tpu.memory_space<vmem>>, %arg3: memref<1x128xf32, #tpu.memory_space<vmem>>, %arg4: memref<16x128xf32, #tpu.memory_space<vmem>>) attributes {dimension_semantics = [#tpu.dimension_semantics<parallel>], iteration_bounds = array<i64: 1>, scalar_prefetch = 0 : i64, scratch_operands = 0 : i64, tpu.core_type = #tpu.core_type<tc>, window_params = [{transform_indices = @transform_0, window_bounds = array<i64: 16, 128>}, {pipeline_mode = #tpu.pipeline_mode<synchronous>, transform_indices = @transform_1, window_bounds = array<i64: 1, 128>}, {pipeline_mode = #tpu.pipeline_mode<synchronous>, transform_indices = @transform_2, window_bounds = array<i64: 1, 128>}, {transform_indices = @transform_3, window_bounds = array<i64: 16, 128>}]} {
    %c0 = arith.constant 0 : index
    %c0_0 = arith.constant 0 : index
    %0 = vector.load %arg1[%c0, %c0_0] : memref<16x128xf32, #tpu.memory_space<vmem>>, vector<16x128xf32>
    %cst = arith.constant dense<0.000000e+00> : vector<16xf32>
    %1 = vector.multi_reduction <add>, %0, %cst [1] : vector<16x128xf32> to vector<16xf32>
    %2 = vector.shape_cast %1 : vector<16xf32> to vector<16x1xf32>
    %cst_1 = arith.constant 1.280000e+02 : f32
    %3 = vector.broadcast %cst_1 : f32 to vector<16x1xf32>
    %4 = arith.divf %2, %3 : vector<16x1xf32>
    %5 = vector.broadcast %4 : vector<16x1xf32> to vector<16x128xf32>
    %6 = arith.subf %0, %5 : vector<16x128xf32>
    %7 = arith.mulf %6, %6 : vector<16x128xf32>
    %cst_2 = arith.constant dense<0.000000e+00> : vector<16xf32>
    %8 = vector.multi_reduction <add>, %7, %cst_2 [1] : vector<16x128xf32> to vector<16xf32>
    %9 = vector.shape_cast %8 : vector<16xf32> to vector<16x1xf32>
    %cst_3 = arith.constant 0.00787401571 : f32
    %10 = vector.broadcast %cst_3 : f32 to vector<16x1xf32>
    %11 = arith.mulf %9, %10 : vector<16x1xf32>
    %12 = math.sqrt %11 : vector<16x1xf32>
    %cst_4 = arith.constant 9.99999997E-7 : f32
    %13 = vector.broadcast %cst_4 : f32 to vector<16x1xf32>
    %14 = arith.addf %12, %13 : vector<16x1xf32>
    %15 = tpu.reciprocal %14 : vector<16x1xf32> -> vector<16x1xf32>
    %c0_5 = arith.constant 0 : index
    %c0_6 = arith.constant 0 : index
    %16 = vector.load %arg2[%c0_5, %c0_6] : memref<1x128xf32, #tpu.memory_space<vmem>>, vector<1x128xf32>
    %c0_7 = arith.constant 0 : index
    %c0_8 = arith.constant 0 : index
    %17 = vector.load %arg3[%c0_7, %c0_8] : memref<1x128xf32, #tpu.memory_space<vmem>>, vector<1x128xf32>
    %18 = vector.broadcast %15 : vector<16x1xf32> to vector<16x128xf32>
    %19 = arith.mulf %6, %18 : vector<16x128xf32>
    %20 = vector.broadcast %16 : vector<1x128xf32> to vector<16x128xf32>
    %21 = arith.mulf %20, %19 : vector<16x128xf32>
    %22 = vector.broadcast %17 : vector<1x128xf32> to vector<16x128xf32>
    %23 = arith.addf %21, %22 : vector<16x128xf32>
    %c0_9 = arith.constant 0 : index
    %c0_10 = arith.constant 0 : index
    %24 = vector.load %arg4[%c0_9, %c0_10] : memref<16x128xf32, #tpu.memory_space<vmem>>, vector<16x128xf32>
    tpu.vector_store %arg4[%c0_9, %c0_10], %23 {strides = array<i32>} : memref<16x128xf32, #tpu.memory_space<vmem>>, vector<16x128xf32>,
    return
  }
  func.func @transform_0(%arg0: i32) -> (i32, i32) {
    %c0_i32 = arith.constant 0 : i32
    %c0_i32_0 = arith.constant 0 : i32
    return %arg0, %c0_i32 : i32, i32
  }
  func.func @transform_1(%arg0: i32) -> (i32, i32) {
    %c0_i32 = arith.constant 0 : i32
    %c0_i32_0 = arith.constant 0 : i32
    %c0_i32_1 = arith.constant 0 : i32
    return %c0_i32, %c0_i32_0 : i32, i32
  }
  func.func @transform_2(%arg0: i32) -> (i32, i32) {
    %c0_i32 = arith.constant 0 : i32
    %c0_i32_0 = arith.constant 0 : i32
    %c0_i32_1 = arith.constant 0 : i32
    return %c0_i32, %c0_i32_0 : i32, i32
  }
  func.func @transform_3(%arg0: i32) -> (i32, i32) {
    %c0_i32 = arith.constant 0 : i32
    %c0_i32_0 = arith.constant 0 : i32
    return %arg0, %c0_i32 : i32, i32
  }
}

</mosaic_0001>

<llo_original>
// kernel: tpu_custom_call.1
$region0: #{tpu_custom_call.1}
  #allocation0 [shape = 'u32[]', space=smem, size = 0x4, offset = 0x4, fixed_abs, tag = 'smem constant byte address 0x4 - core index']
  #allocation1 [shape = 'u32[144,128]{1,0:T(1,128)}', space=vmem, size = 0x12000, scoped, tag = 'internal scratch']
  %s0 = inlined_call_operand.hbm [shape: f32[16,128], index: 0, kind: input, shape index: {}]
  %s1 = inlined_call_operand.vmem [shape: f32[1,128], index: 1, kind: input, shape index: {}]
  %s2 = inlined_call_operand.vmem [shape: f32[1,128], index: 2, kind: input, shape index: {}]
  %s3 = inlined_call_operand.hbm [shape: f32[16,128], index: 3, kind: output, shape index: {}]
  %s4 = sld [smem:[#allocation0]]
  $region26: #{tpu_custom_call.1} parent=0
    _
  %s6 = ssub.s32 1, %s4
  %s7 = scalar_select 0, %s6, %s4
  $region1: #{tpu_custom_call.1} parent=0
    #allocation2 [shape = 'u8[8192]{0}', space=vmem, size = 0x2000, scoped, tag = 'input window, operand 0, single buffered']
    #allocation3 [shape = 's32[1]{0}', space=sflag, size = 0x4, scoped, tag = 'scoped memory for tpu_custom_call.1']
    #allocation4 [shape = 's32[1]{0}', space=sflag, size = 0x4, scoped, tag = 'scoped memory for tpu_custom_call.1']
    #allocation5 [shape = 'u8[8192]{0}', space=vmem, size = 0x2000, scoped, tag = 'output window, operand 0, single buffered']
    %8 = vsyncpa [#allocation3], 0
    %9 = vsyncpa [#allocation4], 0
    // Predicated region
    $region2: #{tpu_custom_call.1} parent=1 // pred_check
      _
    $region3: #{tpu_custom_call.1} parent=1 // pred_check_branch
      %11 = sbr.rel (0) target = $region5
    $region4: #{tpu_custom_call.1} parent=1 // pred_region
      %s13 = ssub.s32 256, 256
      %14 = vsyncadd [#allocation3], %s13
      %s15 = sshll.u32 [#allocation2], 4
      %s16 = int_to_ptr.vmem [resolvable:$true] %s15
      %21 = dma.hbm_to_vmem [thread:$0]  %s0, 256, %s16, [#allocation3], 128, 128, 8
    $region5: #{tpu_custom_call.1} parent=1 // pred_fallthru
      _
    // Predicated region
    $region6: #{tpu_custom_call.1} parent=1 // pred_check
      _
    $region7: #{tpu_custom_call.1} parent=1 // pred_check_branch
      %23 = sbr.rel (0) target = $region9
    $region8: #{tpu_custom_call.1} parent=1 // pred_region
      _
    $region9: #{tpu_custom_call.1} parent=1 // pred_fallthru
      _
    // Predicated region
    $region10: #{tpu_custom_call.1} parent=1 // pred_check
      _
    $region11: #{tpu_custom_call.1} parent=1 // pred_check_branch
      %25 = sbr.rel (0) target = $region13
    $region12: #{tpu_custom_call.1} parent=1 // pred_region
      _
    $region13: #{tpu_custom_call.1} parent=1 // pred_fallthru
      _
    // Predicated region
    $region14: #{tpu_custom_call.1} parent=1 // pred_check
      _
    $region15: #{tpu_custom_call.1} parent=1 // pred_check_branch
      %27 = sbr.rel (0) target = $region17
    $region16: #{tpu_custom_call.1} parent=1 // pred_region
      %28 = dma.done [#allocation3], 256
    $region17: #{tpu_custom_call.1} parent=1 // pred_fallthru
      _
    %v29 = vld [vmem:[#allocation2] sm:$0xff]
    %v30 = vld [vmem:[#allocation2 + $0x8] sm:$0xff]
    %31 = vadd.xlane.f32.xlu0 %v29
    %v32 = vpop.xlane.xlu0 %31
    %33 = vadd.xlane.f32.xlu0 %v30
    %v34 = vpop.xlane.xlu0 %33
    %v35 = vrcp.pop 128.0
    %v36 = vmul.f32 %v32, %v35
    %v37 = vmul.f32 %v34, %v35
    %v38 = vsub.f32 %v29, %v36
    %v39 = vsub.f32 %v30, %v37
    %v40 = vmul.f32 %v38, %v38
    %v41 = vmul.f32 %v39, %v39
    %42 = vadd.xlane.f32.xlu0 %v40
    %v43 = vpop.xlane.xlu0 %42
    %44 = vadd.xlane.f32.xlu0 %v41
    %v45 = vpop.xlane.xlu0 %44
    %v46 = vmul.f32 %v43, 0.007874016
    %v47 = vmul.f32 %v45, 0.007874016
    %v48 = vrsqrt.pop %v46
    %v49 = vmul.f32 %v46, %v48
    %vm50 = vcmp.eq.f32.partialorder %v46, inf
    %v51 = vsel %vm50, %v46, %v49
    %vm52 = vcmp.eq.f32.partialorder %v46, 0.0
    %v53 = vand.u32 %v46, 2147483648
    %v54 = vsel %vm52, %v53, %v51
    %v55 = vrsqrt.pop %v47
    %v56 = vmul.f32 %v47, %v55
    %vm57 = vcmp.eq.f32.partialorder %v47, inf
    %v58 = vsel %vm57, %v47, %v56
    %vm59 = vcmp.eq.f32.partialorder %v47, 0.0
    %v60 = vand.u32 %v47, 2147483648
    %v61 = vsel %vm59, %v60, %v58
    %v62 = vadd.f32 %v54, 1e-06
    %v63 = vadd.f32 %v61, 1e-06
    %v64 = vrcp.pop %v62
    %v65 = vrcp.pop %v63
    %v66 = vld [vmem:[%s1] sm:$0x1]
    %v67 = vld [vmem:[%s2] sm:$0x1]
    %v68 = vmul.f32 %v38, %v64
    %v69 = vmul.f32 %v39, %v65
    %v71 = vlaneseq
    %v72 = vshrl.u32 %v71, 7
    %v73 = vsub.s32 0, %v72
    %v74 = vrot.slane %v66, %v73
    %v76 = vmul.f32 %v74, %v68
    %v77 = vmul.f32 %v74, %v69
    %v79 = vlaneseq
    %v80 = vshrl.u32 %v79, 7
    %v81 = vsub.s32 0, %v80
    %v82 = vrot.slane %v67, %v81
    %v84 = vadd.f32 %v76, %v82
    %v85 = vadd.f32 %v77, %v82
    %86 = vst [vmem:[#allocation5] sm:$0xff] %v84
    %87 = vst [vmem:[#allocation5 + $0x8] sm:$0xff] %v85
    // Predicated region
    $region18: #{tpu_custom_call.1} parent=1 // pred_check
      _
    $region19: #{tpu_custom_call.1} parent=1 // pred_check_branch
      %89 = sbr.rel (0) target = $region21
    $region20: #{tpu_custom_call.1} parent=1 // pred_region
      %s91 = ssub.s32 256, 256
      %92 = vsyncadd [#allocation4], %s91
      %s93 = sshll.u32 [#allocation5], 4
      %s94 = int_to_ptr.vmem [resolvable:$true] %s93
      %99 = dma.vmem_to_hbm [thread:$0]  %s94, 256, %s3, [#allocation4], 128, 128, 8
    $region21: #{tpu_custom_call.1} parent=1 // pred_fallthru
      _
    // Predicated region
    $region22: #{tpu_custom_call.1} parent=1 // pred_check
      _
    $region23: #{tpu_custom_call.1} parent=1 // pred_check_branch
      %101 = sbr.rel (0) target = $region25
    $region24: #{tpu_custom_call.1} parent=1 // pred_region
      %102 = dma.done [#allocation4], 256
    $region25: #{tpu_custom_call.1} parent=1 // pred_fallthru
      _
    %103 = vsyncpa [#allocation3], 1
    %104 = vsyncpa [#allocation4], 1

</llo_original>
